<compile_context>
chip_gen: v7x
topology: tpu7x:2x2x1
jax: 0.10.0
libtpu: 0.0.40
codegen_flags: <defaults>
</compile_context>

<pallas_src>
import functools

import jax
import jax.numpy as jnp
from jax.experimental import pallas as pl
from jax.experimental.pallas import tpu as pltpu

_LANES = 128
_MAX_BLOCK_ROWS = 2048   # 2048 x 128 f32 = 1 MiB per input per pipeline buffer.


def _cdiv(a, b):
    return -(-a // b)


def _make_kernel(block_rows, blocks_per_par, n_valid, aligned):
    """Builds the reduction kernel; all sizes are static Python ints."""
    block_elems = block_rows * _LANES

    def kernel(att_ref, pr_ref, out_ref, acc_sum, acc_max, acc_min, acc_d):
        p = pl.program_id(0)            # parallel (core) axis
        i = pl.program_id(1)            # reduction axis
        last = pl.num_programs(1) - 1

        @pl.when(i == 0)
        def _init():
            acc_sum[...] = jnp.zeros_like(acc_sum)
            acc_d[...] = jnp.zeros_like(acc_d)
            acc_max[...] = jnp.full_like(acc_max, -jnp.inf)
            acc_min[...] = jnp.full_like(acc_min, jnp.inf)

        att = att_ref[...].astype(jnp.float32)
        pr = pr_ref[...].astype(jnp.float32)
        sq = att * att
        diff = att - jnp.abs(pr)
        dsq = diff * diff

        def _accumulate(sq_v, dsq_v, mx_v, mn_v):
            acc_sum[...] += jnp.sum(sq_v, axis=0, keepdims=True)
            acc_d[...] += jnp.sum(dsq_v, axis=0, keepdims=True)
            acc_max[...] = jnp.maximum(
                acc_max[...], jnp.max(mx_v, axis=0, keepdims=True))
            acc_min[...] = jnp.minimum(
                acc_min[...], jnp.min(mn_v, axis=0, keepdims=True))

        if aligned:
            # Every block of every core is fully valid: no masks at all.
            _accumulate(sq, dsq, att, att)
        else:
            b = p * blocks_per_par + i            # global (unclamped) block id
            start = b * block_elems               # flat start index

            @pl.when(start + block_elems <= n_valid)   # fully valid: fast path
            def _full():
                _accumulate(sq, dsq, att, att)

            @pl.when(start + block_elems > n_valid)    # tail / duplicate block
            def _tail():
                rows_id = jax.lax.broadcasted_iota(
                    jnp.int32, (block_rows, _LANES), 0)
                lanes_id = jax.lax.broadcasted_iota(
                    jnp.int32, (block_rows, _LANES), 1)
                local = rows_id * _LANES + lanes_id
                valid = local < (n_valid - start)      # all-False if duplicate
                _accumulate(jnp.where(valid, sq, 0.0),
                            jnp.where(valid, dsq, 0.0),
                            jnp.where(valid, att, -jnp.inf),
                            jnp.where(valid, att, jnp.inf))

        @pl.when(i == last)
        def _finalize():
            out_ref[0] = jnp.concatenate(
                [acc_sum[...], acc_max[...], acc_min[...], acc_d[...]], axis=0)

    return kernel


@functools.partial(jax.jit, static_argnames=("gamma",))
def attention_loss_v3(attention, probs, gamma=0.2):
    """JAX/Pallas equivalent of AttentionLossV3.forward.

    Returns (gamma * (b + c + d), (a, b, c, d)) with:
      a = mean(attention**2)
      b = (1 - max(attention))**2
      c = min(attention)**2
      d = mean((attention - abs(probs))**2)
    """
    assert attention.shape == probs.shape, "attention and probs must share a shape"
    n = attention.size
    assert n > 0, "empty input"

    # --- static tiling math (all Python ints under jit) --------------------
    rows = _cdiv(n, _LANES)
    # Single full-extent block when small (legal even if rows % 8 != 0 because
    # it equals the full array dim); otherwise a multiple-of-8 block with a
    # partial (masked) last block.
    block_rows = rows if rows <= _MAX_BLOCK_ROWS else _MAX_BLOCK_ROWS
    block_elems = block_rows * _LANES
    n_blocks = _cdiv(rows, block_rows)
    n_par = 2 if n_blocks >= 2 else 1            # 2-way split for v7x megacore
    blocks_per_par = _cdiv(n_blocks, n_par)
    aligned = (n == n_par * blocks_per_par * block_elems)

    # --- layout plumbing: lane-dense 2D slabs in native dtype --------------
    att_flat = attention.reshape(-1)
    pr_flat = probs.reshape(-1)
    pad = rows * _LANES - n                      # <= 127 elements
    if pad:
        att_flat = jnp.pad(att_flat, (0, pad))
        pr_flat = jnp.pad(pr_flat, (0, pad))
    att2d = att_flat.reshape(rows, _LANES)
    pr2d = pr_flat.reshape(rows, _LANES)

    def block_index(p, i):
        # Clamp so the (possible) duplicate block on an odd split never maps
        # out of bounds; the kernel masks its contribution to zero.
        b = p * blocks_per_par + i
        return (jnp.minimum(b, n_blocks - 1), 0)

    kernel = _make_kernel(block_rows, blocks_per_par, n, aligned)

    stats = pl.pallas_call(
        kernel,
        out_shape=jax.ShapeDtypeStruct((n_par, 4, _LANES), jnp.float32),
        grid=(n_par, blocks_per_par),
        in_specs=[
            pl.BlockSpec((block_rows, _LANES), block_index),
            pl.BlockSpec((block_rows, _LANES), block_index),
        ],
        out_specs=pl.BlockSpec((1, 4, _LANES), lambda p, i: (p, 0, 0)),
        scratch_shapes=[pltpu.VMEM((1, _LANES), jnp.float32)] * 4,
        compiler_params=pltpu.CompilerParams(
            dimension_semantics=("parallel", "arbitrary")),
    )(att2d, pr2d)

    # --- cheap final scalar algebra in plain JAX ----------------------------
    sum_sq = jnp.sum(stats[:, 0, :])
    att_max = jnp.max(stats[:, 1, :])
    att_min = jnp.min(stats[:, 2, :])
    sum_d = jnp.sum(stats[:, 3, :])

    inv_n = jnp.float32(1.0 / n)
    a = sum_sq * inv_n
    b = (jnp.float32(1.0) - att_max) ** 2
    c = att_min ** 2
    d = sum_d * inv_n
    loss = jnp.float32(gamma) * (b + c + d)
    return loss, (a, b, c, d)


def _reference(attention, probs, gamma=0.2):
    att = attention.astype(jnp.float32)
    pr = probs.astype(jnp.float32)
    a = jnp.mean(att ** 2)
    b = (1.0 - jnp.max(att)) ** 2
    c = jnp.min(att) ** 2
    d = jnp.mean((att - jnp.abs(pr)) ** 2)
    return gamma * (b + c + d), (a, b, c, d)


def _check(got, want, rtol, atol, tag):
    assert jnp.allclose(got, want, rtol=rtol, atol=atol), (tag, got, want)


if __name__ == "__main__":
    key = jax.random.PRNGKey(0)
    k1, k2, k3, k4, k5, k6 = jax.random.split(key, 6)

    # 1) Aligned case: 2*4*16*16 = 2048 elements (single full block, no mask).
    attention = jax.random.uniform(k1, (2, 4, 16, 16), dtype=jnp.float32)
    probs = jax.random.normal(k2, (2, 4, 16, 16), dtype=jnp.float32)
    loss, stats = attention_loss_v3(attention, probs, gamma=0.2)
    jax.block_until_ready(loss)
    ref_loss, refs = _reference(attention, probs, gamma=0.2)
    _check(loss, ref_loss, 1e-5, 1e-6, "loss-aligned")
    for got, want in zip(stats, refs):
        _check(got, want, 1e-5, 1e-6, "stat-aligned")

    # 2) Small unaligned case (3*5*7*11 = 1155 elements): exercises the
    #    <=127-element pad + in-kernel tail mask.  Shifted positive so
    #    unmasked padding zeros would corrupt min/max.
    attention2 = jax.random.normal(k3, (3, 5, 7, 11), dtype=jnp.float32) + 5.0
    probs2 = jax.random.normal(k4, (3, 5, 7, 11), dtype=jnp.float32)
    loss2, stats2 = attention_loss_v3(attention2, probs2, gamma=0.2)
    jax.block_until_ready(loss2)
    ref_loss2, refs2 = _reference(attention2, probs2, gamma=0.2)
    _check(loss2, ref_loss2, 1e-5, 1e-6, "loss-unaligned")
    for got, want in zip(stats2, refs2):
        _check(got, want, 1e-5, 1e-6, "stat-unaligned")

    # 3) Multi-block unaligned case (9*250*251 = 564750 elems -> 3 real blocks,
    #    odd split over 2 "cores"): exercises the partial last block AND the
    #    clamped duplicate block.  Values in [3, 4] so any unmasked garbage or
    #    zero padding would corrupt min/max/sums.
    attention3 = jax.random.uniform(k5, (9, 250, 251), dtype=jnp.float32) + 3.0
    probs3 = jax.random.normal(k6, (9, 250, 251), dtype=jnp.float32)
    loss3, stats3 = attention_loss_v3(attention3, probs3, gamma=0.2)
    jax.block_until_ready(loss3)
    ref_loss3, refs3 = _reference(attention3, probs3, gamma=0.2)
    _check(loss3, ref_loss3, 1e-4, 1e-5, "loss-multiblock")
    for got, want in zip(stats3, refs3):
        _check(got, want, 1e-4, 1e-5, "stat-multiblock")

    # 4) bf16 inputs are streamed natively and upcast in-register.
    att_bf16 = attention.astype(jnp.bfloat16)
    pr_bf16 = probs.astype(jnp.bfloat16)
    loss4, _ = attention_loss_v3(att_bf16, pr_bf16, gamma=0.2)
    jax.block_until_ready(loss4)
    ref_loss4, _ = _reference(att_bf16.astype(jnp.float32),
                              pr_bf16.astype(jnp.float32), gamma=0.2)
    _check(loss4, ref_loss4, 1e-4, 1e-5, "loss-bf16")

    print("KERNEL_OK")
</pallas_src>

<mosaic_0001>
module attributes {stable_mosaic.version = 11 : i64} {
  func.func @kernel(%arg0: i32, %arg1: i32, %arg2: memref<16x128xf32, #tpu.memory_space<vmem>>, %arg3: memref<16x128xf32, #tpu.memory_space<vmem>>, %arg4: memref<1x4x128xf32, #tpu.memory_space<vmem>>, %arg5: memref<1x128xf32, #tpu.memory_space<vmem>>, %arg6: memref<1x128xf32, #tpu.memory_space<vmem>>, %arg7: memref<1x128xf32, #tpu.memory_space<vmem>>, %arg8: memref<1x128xf32, #tpu.memory_space<vmem>>) attributes {dimension_semantics = [#tpu.dimension_semantics<parallel>, #tpu.dimension_semantics<arbitrary>], iteration_bounds = array<i64: 1, 1>, scalar_prefetch = 0 : i64, scratch_operands = 4 : i64, tpu.core_type = #tpu.core_type<tc>, window_params = [{transform_indices = @transform_0, window_bounds = array<i64: 16, 128>}, {transform_indices = @transform_1, window_bounds = array<i64: 16, 128>}, {transform_indices = @transform_2, window_bounds = array<i64: 1, 4, 128>}]} {
    %c0_i32 = arith.constant 0 : i32
    %0 = arith.cmpi eq, %arg1, %c0_i32 : i32
    %1 = arith.extui %0 : i1 to i32
    %c0_i32_0 = arith.constant 0 : i32
    %2 = arith.cmpi ne, %1, %c0_i32_0 : i32
    scf.if %2 {
      %cst_25 = arith.constant 0.000000e+00 : f32
      %32 = vector.broadcast %cst_25 : f32 to vector<1x128xf32>
      %c0_26 = arith.constant 0 : index
      %c0_27 = arith.constant 0 : index
      %33 = vector.load %arg5[%c0_26, %c0_27] : memref<1x128xf32, #tpu.memory_space<vmem>>, vector<1x128xf32>
      tpu.vector_store %arg5[%c0_26, %c0_27], %32 {strides = array<i32>} : memref<1x128xf32, #tpu.memory_space<vmem>>, vector<1x128xf32>,
      %cst_28 = arith.constant 0.000000e+00 : f32
      %34 = vector.broadcast %cst_28 : f32 to vector<1x128xf32>
      %c0_29 = arith.constant 0 : index
      %c0_30 = arith.constant 0 : index
      %35 = vector.load %arg8[%c0_29, %c0_30] : memref<1x128xf32, #tpu.memory_space<vmem>>, vector<1x128xf32>
      tpu.vector_store %arg8[%c0_29, %c0_30], %34 {strides = array<i32>} : memref<1x128xf32, #tpu.memory_space<vmem>>, vector<1x128xf32>,
      %cst_31 = arith.constant 0xFF800000 : f32
      %36 = vector.broadcast %cst_31 : f32 to vector<1x128xf32>
      %c0_32 = arith.constant 0 : index
      %c0_33 = arith.constant 0 : index
      %37 = vector.load %arg6[%c0_32, %c0_33] : memref<1x128xf32, #tpu.memory_space<vmem>>, vector<1x128xf32>
      tpu.vector_store %arg6[%c0_32, %c0_33], %36 {strides = array<i32>} : memref<1x128xf32, #tpu.memory_space<vmem>>, vector<1x128xf32>,
      %cst_34 = arith.constant 0x7F800000 : f32
      %38 = vector.broadcast %cst_34 : f32 to vector<1x128xf32>
      %c0_35 = arith.constant 0 : index
      %c0_36 = arith.constant 0 : index
      %39 = vector.load %arg7[%c0_35, %c0_36] : memref<1x128xf32, #tpu.memory_space<vmem>>, vector<1x128xf32>
      tpu.vector_store %arg7[%c0_35, %c0_36], %38 {strides = array<i32>} : memref<1x128xf32, #tpu.memory_space<vmem>>, vector<1x128xf32>,
    } else {
    }
    %c0 = arith.constant 0 : index
    %c0_1 = arith.constant 0 : index
    %3 = vector.load %arg2[%c0, %c0_1] : memref<16x128xf32, #tpu.memory_space<vmem>>, vector<16x128xf32>
    %c0_2 = arith.constant 0 : index
    %c0_3 = arith.constant 0 : index
    %4 = vector.load %arg3[%c0_2, %c0_3] : memref<16x128xf32, #tpu.memory_space<vmem>>, vector<16x128xf32>
    %5 = arith.mulf %3, %3 : vector<16x128xf32>
    %6 = math.absf %4 : vector<16x128xf32>
    %7 = arith.subf %3, %6 : vector<16x128xf32>
    %8 = arith.mulf %7, %7 : vector<16x128xf32>
    %c0_4 = arith.constant 0 : index
    %c0_5 = arith.constant 0 : index
    %9 = vector.load %arg5[%c0_4, %c0_5] : memref<1x128xf32, #tpu.memory_space<vmem>>, vector<1x128xf32>
    %cst = arith.constant dense<0.000000e+00> : vector<128xf32>
    %10 = vector.multi_reduction <add>, %5, %cst [0] : vector<16x128xf32> to vector<128xf32>
    %11 = vector.shape_cast %10 : vector<128xf32> to vector<1x128xf32>
    %12 = arith.addf %9, %11 : vector<1x128xf32>
    %c0_6 = arith.constant 0 : index
    %c0_7 = arith.constant 0 : index
    %13 = vector.load %arg5[%c0_6, %c0_7] : memref<1x128xf32, #tpu.memory_space<vmem>>, vector<1x128xf32>
    tpu.vector_store %arg5[%c0_6, %c0_7], %12 {strides = array<i32>} : memref<1x128xf32, #tpu.memory_space<vmem>>, vector<1x128xf32>,
    %c0_8 = arith.constant 0 : index
    %c0_9 = arith.constant 0 : index
    %14 = vector.load %arg8[%c0_8, %c0_9] : memref<1x128xf32, #tpu.memory_space<vmem>>, vector<1x128xf32>
    %cst_10 = arith.constant dense<0.000000e+00> : vector<128xf32>
    %15 = vector.multi_reduction <add>, %8, %cst_10 [0] : vector<16x128xf32> to vector<128xf32>
    %16 = vector.shape_cast %15 : vector<128xf32> to vector<1x128xf32>
    %17 = arith.addf %14, %16 : vector<1x128xf32>
    %c0_11 = arith.constant 0 : index
    %c0_12 = arith.constant 0 : index
    %18 = vector.load %arg8[%c0_11, %c0_12] : memref<1x128xf32, #tpu.memory_space<vmem>>, vector<1x128xf32>
    tpu.vector_store %arg8[%c0_11, %c0_12], %17 {strides = array<i32>} : memref<1x128xf32, #tpu.memory_space<vmem>>, vector<1x128xf32>,
    %c0_13 = arith.constant 0 : index
    %c0_14 = arith.constant 0 : index
    %19 = vector.load %arg6[%c0_13, %c0_14] : memref<1x128xf32, #tpu.memory_space<vmem>>, vector<1x128xf32>
    %cst_15 = arith.constant dense<0xFF800000> : vector<128xf32>
    %20 = vector.multi_reduction <maximumf>, %3, %cst_15 [0] : vector<16x128xf32> to vector<128xf32>
    %21 = vector.shape_cast %20 : vector<128xf32> to vector<1x128xf32>
    %22 = arith.maximumf %19, %21 : vector<1x128xf32>
    %c0_16 = arith.constant 0 : index
    %c0_17 = arith.constant 0 : index
    %23 = vector.load %arg6[%c0_16, %c0_17] : memref<1x128xf32, #tpu.memory_space<vmem>>, vector<1x128xf32>
    tpu.vector_store %arg6[%c0_16, %c0_17], %22 {strides = array<i32>} : memref<1x128xf32, #tpu.memory_space<vmem>>, vector<1x128xf32>,
    %c0_18 = arith.constant 0 : index
    %c0_19 = arith.constant 0 : index
    %24 = vector.load %arg7[%c0_18, %c0_19] : memref<1x128xf32, #tpu.memory_space<vmem>>, vector<1x128xf32>
    %cst_20 = arith.constant dense<0x7F800000> : vector<128xf32>
    %25 = vector.multi_reduction <minimumf>, %3, %cst_20 [0] : vector<16x128xf32> to vector<128xf32>
    %26 = vector.shape_cast %25 : vector<128xf32> to vector<1x128xf32>
    %27 = arith.minimumf %24, %26 : vector<1x128xf32>
    %c0_21 = arith.constant 0 : index
    %c0_22 = arith.constant 0 : index
    %28 = vector.load %arg7[%c0_21, %c0_22] : memref<1x128xf32, #tpu.memory_space<vmem>>, vector<1x128xf32>
    tpu.vector_store %arg7[%c0_21, %c0_22], %27 {strides = array<i32>} : memref<1x128xf32, #tpu.memory_space<vmem>>, vector<1x128xf32>,
    %c0_i32_23 = arith.constant 0 : i32
    %29 = arith.cmpi eq, %arg1, %c0_i32_23 : i32
    %30 = arith.extui %29 : i1 to i32
    %c0_i32_24 = arith.constant 0 : i32
    %31 = arith.cmpi ne, %30, %c0_i32_24 : i32
    scf.if %31 {
      %c0_25 = arith.constant 0 : index
      %c0_26 = arith.constant 0 : index
      %32 = vector.load %arg5[%c0_25, %c0_26] : memref<1x128xf32, #tpu.memory_space<vmem>>, vector<1x128xf32>
      %c0_27 = arith.constant 0 : index
      %c0_28 = arith.constant 0 : index
      %33 = vector.load %arg6[%c0_27, %c0_28] : memref<1x128xf32, #tpu.memory_space<vmem>>, vector<1x128xf32>
      %c0_29 = arith.constant 0 : index
      %c0_30 = arith.constant 0 : index
      %34 = vector.load %arg7[%c0_29, %c0_30] : memref<1x128xf32, #tpu.memory_space<vmem>>, vector<1x128xf32>
      %c0_31 = arith.constant 0 : index
      %c0_32 = arith.constant 0 : index
      %35 = vector.load %arg8[%c0_31, %c0_32] : memref<1x128xf32, #tpu.memory_space<vmem>>, vector<1x128xf32>
      %36 = tpu.concatenate %32, %33, %34, %35 in 0 : vector<1x128xf32>, vector<1x128xf32>, vector<1x128xf32>, vector<1x128xf32> -> vector<4x128xf32>
      %c0_33 = arith.constant 0 : index
      %c0_34 = arith.constant 0 : index
      %c0_35 = arith.constant 0 : index
      %37 = vector.load %arg4[%c0_33, %c0_34, %c0_35] : memref<1x4x128xf32, #tpu.memory_space<vmem>>, vector<1x4x128xf32>
      %38 = vector.shape_cast %37 : vector<1x4x128xf32> to vector<4x128xf32>
      %39 = vector.shape_cast %36 : vector<4x128xf32> to vector<1x4x128xf32>
      tpu.vector_store %arg4[%c0_33, %c0_34, %c0_35], %39 {strides = array<i32>} : memref<1x4x128xf32, #tpu.memory_space<vmem>>, vector<1x4x128xf32>,
    } else {
    }
    return
  }
  func.func @transform_0(%arg0: i32, %arg1: i32) -> (i32, i32) {
    %c1_i32 = arith.constant 1 : i32
    %0 = arith.muli %arg0, %c1_i32 : i32
    %1 = arith.addi %0, %arg1 : i32
    %c0_i32 = arith.constant 0 : i32
    %2 = arith.minsi %1, %c0_i32 : i32
    %c0_i32_0 = arith.constant 0 : i32
    %c0_i32_1 = arith.constant 0 : i32
    return %2, %c0_i32_0 : i32, i32
  }
  func.func @transform_1(%arg0: i32, %arg1: i32) -> (i32, i32) {
    %c1_i32 = arith.constant 1 : i32
    %0 = arith.muli %arg0, %c1_i32 : i32
    %1 = arith.addi %0, %arg1 : i32
    %c0_i32 = arith.constant 0 : i32
    %2 = arith.minsi %1, %c0_i32 : i32
    %c0_i32_0 = arith.constant 0 : i32
    %c0_i32_1 = arith.constant 0 : i32
    return %2, %c0_i32_0 : i32, i32
  }
  func.func @transform_2(%arg0: i32, %arg1: i32) -> (i32, i32, i32) {
    %c0_i32 = arith.constant 0 : i32
    %c0_i32_0 = arith.constant 0 : i32
    %c0_i32_1 = arith.constant 0 : i32
    return %arg0, %c0_i32, %c0_i32_0 : i32, i32, i32
  }
}

</mosaic_0001>

<llo_original>
// kernel: attention_loss_v3.1
$region0: #{attention_loss_v3.1}
  #allocation0 [shape = 'u32[]', space=smem, size = 0x4, offset = 0x4, fixed_abs, tag = 'smem constant byte address 0x4 - core index']
  #allocation1 [shape = 'u32[144,128]{1,0:T(1,128)}', space=vmem, size = 0x12000, scoped, tag = 'internal scratch']
  #allocation2 [shape = 'f32[1,128]{1,0:T(1,128)}', space=vmem, size = 0x200, scoped, tag = 'scratch operand']
  #allocation3 [shape = 'f32[1,128]{1,0:T(1,128)}', space=vmem, size = 0x200, scoped, tag = 'scratch operand']
  #allocation4 [shape = 'f32[1,128]{1,0:T(1,128)}', space=vmem, size = 0x200, scoped, tag = 'scratch operand']
  #allocation5 [shape = 'f32[1,128]{1,0:T(1,128)}', space=vmem, size = 0x200, scoped, tag = 'scratch operand']
  %s0 = inlined_call_operand.vmem [shape: f32[16,128], index: 0, kind: input, shape index: {}]
  %s1 = inlined_call_operand.vmem [shape: f32[16,128], index: 1, kind: input, shape index: {}]
  %s2 = inlined_call_operand.vmem [shape: f32[1,4,128], index: 2, kind: output, shape index: {}]
  %s3 = sld [smem:[#allocation0]]
  $region26: #{attention_loss_v3.1} parent=0
    _
  %s5 = ssub.s32 1, %s3
  %s6 = scalar_select 0, %s5, %s3
  // Predicated region
  $region2: #{attention_loss_v3.1} parent=0 // pred_check
    _
  $region3: #{attention_loss_v3.1} parent=0 // pred_check_branch
    %8 = sbr.rel (0) target = $region5
  $region4: #{attention_loss_v3.1} parent=0 // pred_region
    %s9 = sadd.s32 0, 0
    %p10 = scmp.lt.s32.totalorder %s9, 0
    %s11 = scalar_select %p10, %s9, 0
    %s12 = smul.u32 2, %s11
    %p13 = scmp.lt.s32.totalorder %s12, 1
    %s14 = scalar_select %p13, %s12, 1
    %s15 = smul.addr %s14, 8
    %s16 = scalar_lea.vmem %s0, %s15
    %s17 = sadd.s32 0, 0
    %p18 = scmp.lt.s32.totalorder %s17, 0
    %s19 = scalar_select %p18, %s17, 0
    %s20 = smul.u32 2, %s19
  $region5: #{attention_loss_v3.1} parent=0 // pred_fallthru
    _
  // Predicated region
  $region6: #{attention_loss_v3.1} parent=0 // pred_check
    _
  $region7: #{attention_loss_v3.1} parent=0 // pred_check_branch
    %22 = sbr.rel (0) target = $region9
  $region8: #{attention_loss_v3.1} parent=0 // pred_region
    %s23 = sadd.s32 0, 0
    %p24 = scmp.lt.s32.totalorder %s23, 0
    %s25 = scalar_select %p24, %s23, 0
    %s26 = smul.u32 2, %s25
    %p27 = scmp.lt.s32.totalorder %s26, 1
    %s28 = scalar_select %p27, %s26, 1
    %s29 = smul.addr %s28, 8
    %s30 = scalar_lea.vmem %s1, %s29
    %s31 = sadd.s32 0, 0
    %p32 = scmp.lt.s32.totalorder %s31, 0
    %s33 = scalar_select %p32, %s31, 0
    %s34 = smul.u32 2, %s33
  $region9: #{attention_loss_v3.1} parent=0 // pred_fallthru
    _
  %s35 = sadd.s32 0, 0
  %p36 = scmp.lt.s32.totalorder %s35, 0
  %s37 = scalar_select %p36, %s35, 0
  %s38 = smul.u32 2, %s37
  %p39 = scmp.lt.s32.totalorder %s38, 1
  %s40 = scalar_select %p39, %s38, 1
  %s41 = smul.addr %s40, 8
  %s42 = scalar_lea.vmem %s0, %s41
  %s43 = sadd.s32 0, 0
  %p44 = scmp.lt.s32.totalorder %s43, 0
  %s45 = scalar_select %p44, %s43, 0
  %s46 = smul.u32 2, %s45
  %p47 = scmp.lt.s32.totalorder %s46, 1
  %s48 = scalar_select %p47, %s46, 1
  %s49 = smul.addr %s48, 8
  %s50 = scalar_lea.vmem %s1, %s49
  %s51 = sadd.s32 0, 0
  %p52 = scmp.lt.s32.totalorder %s51, 0
  %s53 = scalar_select %p52, %s51, 0
  %s54 = smul.u32 2, %s53
  %p55 = scmp.lt.s32.totalorder %s54, 1
  %s56 = scalar_select %p55, %s54, 1
  %s57 = smul.addr %s56, 8
  %s58 = scalar_lea.vmem %s0, %s57
  %s59 = sadd.s32 0, 0
  %p60 = scmp.lt.s32.totalorder %s59, 0
  %s61 = scalar_select %p60, %s59, 0
  %s62 = smul.u32 2, %s61
  %s63 = sadd.s32 0, 0
  %p64 = scmp.lt.s32.totalorder %s63, 0
  %s65 = scalar_select %p64, %s63, 0
  %s66 = smul.u32 2, %s65
  %p67 = scmp.lt.s32.totalorder %s66, 1
  %s68 = scalar_select %p67, %s66, 1
  %s69 = smul.addr %s68, 8
  %s70 = scalar_lea.vmem %s1, %s69
  %s71 = sadd.s32 0, 0
  %p72 = scmp.lt.s32.totalorder %s71, 0
  %s73 = scalar_select %p72, %s71, 0
  %s74 = smul.u32 2, %s73
  %p75 = scmp.eq.s32.totalorder 0, 0
  // Predicated region
  $region10: #{attention_loss_v3.1} parent=0 // pred_check
    %p76 = pneg %p75
  $region11: #{attention_loss_v3.1} parent=0 // pred_check_branch
    %78 = sbr.rel (%p76) target = $region13
  $region12: #{attention_loss_v3.1} parent=0 // pred_region
    %79 = vst [vmem:[#allocation2] sm:$0x1] 0.0
    %80 = vst [vmem:[#allocation5] sm:$0x1] 0.0
    %81 = vst [vmem:[#allocation3] sm:$0x1] -inf
    %82 = vst [vmem:[#allocation4] sm:$0x1] inf
  $region13: #{attention_loss_v3.1} parent=0 // pred_fallthru
    _
  %v83 = vld [vmem:[%s58] sm:$0xff]
  %v84 = vld [vmem:[%s58 + $0x8] sm:$0xff]
  %v85 = vld [vmem:[%s70] sm:$0xff]
  %v86 = vld [vmem:[%s70 + $0x8] sm:$0xff]
  %v87 = vmul.f32 %v83, %v83
  %v88 = vmul.f32 %v84, %v84
  %v89 = vand.u32 2147483647, %v85
  %v90 = vand.u32 2147483647, %v86
  %v91 = vsub.f32 %v83, %v89
  %v92 = vsub.f32 %v84, %v90
  %v93 = vmul.f32 %v91, %v91
  %v94 = vmul.f32 %v92, %v92
  %v95 = vld [vmem:[#allocation2] sm:$0x1]
  %v96 = vadd.f32 %v87, %v88
  %v97 = vrot.slane %v96, 4
  %v98 = vadd.f32 %v96, %v97
  %v99 = vrot.slane %v98, 2
  %v100 = vadd.f32 %v98, %v99
  %v101 = vrot.slane %v100, 1
  %v102 = vadd.f32 %v100, %v101
  %v103 = vadd.f32 %v95, %v102
  %104 = vst [vmem:[#allocation2] sm:$0x1] %v103
  %v105 = vld [vmem:[#allocation5] sm:$0x1]
  %v106 = vadd.f32 %v93, %v94
  %v107 = vrot.slane %v106, 4
  %v108 = vadd.f32 %v106, %v107
  %v109 = vrot.slane %v108, 2
  %v110 = vadd.f32 %v108, %v109
  %v111 = vrot.slane %v110, 1
  %v112 = vadd.f32 %v110, %v111
  %v113 = vadd.f32 %v105, %v112
  %114 = vst [vmem:[#allocation5] sm:$0x1] %v113
  %v115 = vld [vmem:[#allocation3] sm:$0x1]
  %v116 = vmax.f32 %v83, %v84
  %v117 = vrot.slane %v116, 4
  %v118 = vmax.f32 %v116, %v117
  %v119 = vrot.slane %v118, 2
  %v120 = vmax.f32 %v118, %v119
  %v121 = vrot.slane %v120, 1
  %v122 = vmax.f32 %v120, %v121
  %v123 = vmax.f32 %v115, %v122
  %124 = vst [vmem:[#allocation3] sm:$0x1] %v123
  %v125 = vld [vmem:[#allocation4] sm:$0x1]
  %v126 = vmin.f32 %v83, %v84
  %v127 = vrot.slane %v126, 4
  %v128 = vmin.f32 %v126, %v127
  %v129 = vrot.slane %v128, 2
  %v130 = vmin.f32 %v128, %v129
  %v131 = vrot.slane %v130, 1
  %v132 = vmin.f32 %v130, %v131
  %v133 = vmin.f32 %v125, %v132
  %134 = vst [vmem:[#allocation4] sm:$0x1] %v133
  // Predicated region
  $region14: #{attention_loss_v3.1} parent=0 // pred_check
    %p135 = pneg %p75
  $region15: #{attention_loss_v3.1} parent=0 // pred_check_branch
    %137 = sbr.rel (%p135) target = $region17
  $region16: #{attention_loss_v3.1} parent=0 // pred_region
    %v138 = vld [vmem:[#allocation2] sm:$0x1]
    %v139 = vld [vmem:[#allocation3] sm:$0x1]
    %v140 = vld [vmem:[#allocation4] sm:$0x1]
    %v141 = vld [vmem:[#allocation5] sm:$0x1]
    %v143 = vlaneseq
    %v144 = vshrl.u32 %v143, 7
    %v145 = vsub.s32 0, %v144
    %v146 = vrot.slane %v139, %v145
    %v149 = vlaneseq
    %v150 = vshrl.u32 %v149, 7
    %v151 = vsub.s32 0, %v150
    %v152 = vrot.slane %v140, %v151
    %v155 = vlaneseq
    %v156 = vshrl.u32 %v155, 7
    %v157 = vsub.s32 0, %v156
    %v158 = vrot.slane %v141, %v157
    %vm160 = vcmask 1040384
    %v161 = vsel %vm160, %v138, %v146
    %vm162 = vcmask 1041408
    %v163 = vsel %vm162, %v161, %v152
    %vm164 = vcmask 1042432
    %v165 = vsel %vm164, %v163, %v158
    %166 = vst [vmem:[%s2] sm:$0xf] %v165
  $region17: #{attention_loss_v3.1} parent=0 // pred_fallthru
    _
  // Predicated region
  $region18: #{attention_loss_v3.1} parent=0 // pred_check
    _
  $region19: #{attention_loss_v3.1} parent=0 // pred_check_branch
    %168 = sbr.rel (0) target = $region21
  $region20: #{attention_loss_v3.1} parent=0 // pred_region
    _
  $region21: #{attention_loss_v3.1} parent=0 // pred_fallthru
    _
  // Predicated region
  $region22: #{attention_loss_v3.1} parent=0 // pred_check
    _
  $region23: #{attention_loss_v3.1} parent=0 // pred_check_branch
    %170 = sbr.rel (0) target = $region25
  $region24: #{attention_loss_v3.1} parent=0 // pred_region
    _
  $region25: #{attention_loss_v3.1} parent=0 // pred_fallthru
    _

</llo_original>
